<compile_context>
chip_gen: v5e
topology: v5e:2x2
jax: 0.10.0
libtpu: 0.0.40
codegen_flags: <defaults>
</compile_context>

<pallas_src>
import functools

import jax
import jax.numpy as jnp
from jax import lax
from jax.experimental import pallas as pl
from jax.experimental.pallas import tpu as pltpu


def _round_up(value, multiple):
    return (value + multiple - 1) // multiple * multiple


def _vmem_limit_bytes():
    # Review: derive the VMEM budget from the chip (0.8 x capacity) instead of
    # a hard 64 MiB cap (no headroom on v7x, half of v5e/v6e's 128 MiB).
    try:
        cap = pltpu.get_tpu_info().vmem_capacity_bytes
    except Exception:
        cap = 64 * 1024 * 1024  # conservative (v7x-sized) fallback
    return int(0.8 * cap)


def _message_kernel(x_ref, ni_ref, rel_ref, ew_ref, ef_ref, we_ref, be_ref,
                    msg_ref, *, num_relation, input_dim):
    """One edge tile: gather + edge_linear + edge_weight + relation expansion.

    x_ref  : (n_pad, D)         bf16  all node features (gather source)
    ni_ref : (e_tile, 1)        i32   node_in
    rel_ref: (e_tile, 1)        i32   relation
    ew_ref : (e_tile, 1)        f32   edge weights (0 for padded edges)
    ef_ref : (e_tile, edge_dim) bf16  edge features
    we_ref : (edge_dim, D)      bf16  edge_linear weight (transposed)
    be_ref : (1, D)             f32   edge_linear bias
    msg_ref: (e_tile, rd_pad)   bf16  relation-expanded weighted message
    """
    R, D = num_relation, input_dim
    e_tile = ni_ref.shape[0]
    n_pad = x_ref.shape[0]
    rd_pad = msg_ref.shape[1]

    # Gather x[node_in] via a bf16 one-hot matmul (MXU); 0/1 is exact in bf16.
    # TODO(synk): for very large N replace this with a real (DMA / pl.Element)
    # gather -- the (e_tile, n_pad) one-hot temporary and its O(E*N*D) flops
    # dominate asymptotically and are the first VMEM casualty on v7x.
    iota_nodes = lax.broadcasted_iota(jnp.int32, (e_tile, n_pad), 1)
    onehot_in = (iota_nodes == ni_ref[...]).astype(jnp.bfloat16)
    gathered = jnp.dot(onehot_in, x_ref[...],
                       preferred_element_type=jnp.float32)        # (e_tile, D)

    # message = x[node_in] + edge_linear(edge_feature) + be   (f32 accumulate)
    message = gathered + jnp.dot(ef_ref[...], we_ref[...],
                                 preferred_element_type=jnp.float32) + be_ref[...]
    # TODO(synk): the optional `edge_input` addend of forward() is not wired.
    weighted = (message * ew_ref[...]).astype(jnp.bfloat16)       # (e_tile, D)

    # Relation expansion: column block r holds the message iff relation == r.
    # This hoists all per-relation masking out of the per-node-tile loop, so
    # phase 2 needs only ONE node one-hot matmul per edge tile.
    rel = rel_ref[...]                                            # (e_tile, 1)
    zero = jnp.zeros_like(weighted)
    for r in range(R):
        msg_ref[:, r * D:(r + 1) * D] = jnp.where(rel == r, weighted, zero)
    if rd_pad > R * D:                                            # lane padding
        msg_ref[:, R * D:] = jnp.zeros((e_tile, rd_pad - R * D), msg_ref.dtype)


def _scatter_combine_kernel(no_ref, msg_ref, wl_ref, bl_ref, out_ref, acc_ref):
    """One (node-tile, edge-tile) grid step: scatter-add + final linear/relu.

    no_ref : (1, e_tile)        i32   node_out (pre-transposed row layout)
    msg_ref: (e_tile, rd_pad)   bf16  relation-expanded weighted messages
    wl_ref : (rd_pad, out_pad)  f32   final linear weight (flat, R*D rows used)
    bl_ref : (1, out_pad)       f32   final linear bias
    out_ref: (n_tile, out_pad)  f32   output tile (resident across edge tiles)
    acc_ref: (n_tile, rd_pad)   f32   scatter accumulator (VMEM scratch)
    """
    n_idx = pl.program_id(0)
    e_idx = pl.program_id(1)
    n_tile = out_ref.shape[0]
    e_tile = msg_ref.shape[0]

    @pl.when(e_idx == 0)
    def _():
        acc_ref[...] = jnp.zeros_like(acc_ref)

    # Single fused scatter matmul: node one-hot built directly in the
    # (n_tile, e_tile) orientation (node_out arrives as a (1, e_tile) row, so
    # there is no transpose and the contraction is the standard ((1,),(0,))).
    # Out-of-range node indices simply never match (scatter_add would raise).
    n_base = n_idx * n_tile
    row_iota = lax.broadcasted_iota(jnp.int32, (n_tile, e_tile), 0) + n_base
    onehot = (row_iota == no_ref[...]).astype(jnp.bfloat16)       # (n_tile, e_tile)
    acc_ref[...] += jnp.dot(onehot, msg_ref[...],
                            preferred_element_type=jnp.float32)

    # Finalize on the last edge tile: one K = R*D matmul + bias + relu.
    @pl.when(e_idx == pl.num_programs(1) - 1)
    def _():
        combined = jnp.dot(acc_ref[...], wl_ref[...],
                           preferred_element_type=jnp.float32) + bl_ref[...]
        # TODO(synk): batch_norm=True branch (nn.BatchNorm1d) not implemented;
        # the module under test is built with batch_norm=False.
        out_ref[...] = jnp.maximum(combined, 0.0)   # padded rows hold relu(b)


def geometric_relational_graph_conv(x, edge_list, edge_weight, edge_feature,
                                    params, *, num_relation):
    """Forward pass of GeometricRelationalGraphConv (batch_norm=False, relu)."""
    N, D = x.shape
    E = edge_list.shape[0]
    edge_dim = edge_feature.shape[1]
    W, b, We, be = params["W"], params["b"], params["We"], params["be"]
    out_dim = W.shape[1]
    R = num_relation

    # ---- tiling / padding ---------------------------------------------------
    out_pad = _round_up(out_dim, 128)      # lane-dense output stores
    rd_pad = _round_up(R * D, 128)         # lane-dense message / accumulator
    if N <= 8:
        n_tile = 8
    else:                                  # >= 2 node tiles when N allows, so the
        n_tile = min(256, _round_up(pl.cdiv(N, 2), 8))   # v7x megacore gets fed
    n_pad = _round_up(N, n_tile)
    e_tile = _round_up(E, 8) if E <= 1024 else 1024      # bigger edge tiles
    e_pad = _round_up(E, e_tile)
    n_grid = n_pad // n_tile
    e_grid = e_pad // e_tile

    f32, bf16, i32 = jnp.float32, jnp.bfloat16, jnp.int32
    el = edge_list.astype(i32)
    x_p = jnp.zeros((n_pad, D), bf16).at[:N].set(x.astype(bf16))
    ni_p = jnp.zeros((e_pad, 1), i32).at[:E].set(el[:, 0:1])
    rel_p = jnp.zeros((e_pad, 1), i32).at[:E].set(el[:, 2:3])
    no_p = jnp.zeros((1, e_pad), i32).at[:, :E].set(el[:, 1][None, :])
    ew_p = jnp.zeros((e_pad, 1), f32).at[:E, 0].set(edge_weight.astype(f32))
    ef_p = jnp.zeros((e_pad, edge_dim), bf16).at[:E].set(edge_feature.astype(bf16))
    we_p = We.astype(bf16)
    be_p = be.astype(f32)[None, :]
    wl_p = jnp.zeros((rd_pad, out_pad), f32).at[:R * D, :out_dim].set(W.astype(f32))
    bl_p = jnp.zeros((1, out_pad), f32).at[0, :out_dim].set(b.astype(f32))

    vmem_limit = _vmem_limit_bytes()

    # ---- phase 1: per-edge message (node-tile independent, computed once) ---
    msg_kernel = functools.partial(_message_kernel, num_relation=R, input_dim=D)
    msg_cost = pl.CostEstimate(
        flops=int(2 * e_pad * n_pad * D + 2 * e_pad * edge_dim * D),
        transcendentals=0,
        bytes_accessed=int(2 * x_p.size + 4 * (ni_p.size + rel_p.size + ew_p.size)
                           + 2 * (ef_p.size + we_p.size) + 4 * be_p.size
                           + 2 * e_pad * rd_pad))
    msg_exp = pl.pallas_call(
        msg_kernel,
        out_shape=jax.ShapeDtypeStruct((e_pad, rd_pad), bf16),
        grid_spec=pltpu.PrefetchScalarGridSpec(
            num_scalar_prefetch=0,
            grid=(e_grid,),
            in_specs=[
                pl.BlockSpec((n_pad, D), lambda j: (0, 0)),          # x (bf16)
                pl.BlockSpec((e_tile, 1), lambda j: (j, 0)),         # node_in
                pl.BlockSpec((e_tile, 1), lambda j: (j, 0)),         # relation
                pl.BlockSpec((e_tile, 1), lambda j: (j, 0)),         # edge_weight
                pl.BlockSpec((e_tile, edge_dim), lambda j: (j, 0)),  # edge_feature
                pl.BlockSpec((edge_dim, D), lambda j: (0, 0)),       # We (bf16)
                pl.BlockSpec((1, D), lambda j: (0, 0)),              # be
            ],
            out_specs=pl.BlockSpec((e_tile, rd_pad), lambda j: (j, 0)),
        ),
        compiler_params=pltpu.CompilerParams(
            dimension_semantics=("parallel",),
            vmem_limit_bytes=vmem_limit),
        cost_estimate=msg_cost,
    )(x_p, ni_p, rel_p, ew_p, ef_p, we_p, be_p)

    # ---- phase 2: scatter-add over edge tiles + combine per node tile -------
    sc_cost = pl.CostEstimate(
        flops=int(2 * n_pad * e_pad * rd_pad + 2 * n_pad * rd_pad * out_pad),
        transcendentals=0,
        bytes_accessed=int(4 * no_p.size + n_grid * 2 * e_pad * rd_pad
                           + 4 * (wl_p.size + bl_p.size) + 4 * n_pad * out_pad))
    out = pl.pallas_call(
        _scatter_combine_kernel,
        out_shape=jax.ShapeDtypeStruct((n_pad, out_pad), f32),
        grid_spec=pltpu.PrefetchScalarGridSpec(
            num_scalar_prefetch=0,
            grid=(n_grid, e_grid),
            in_specs=[
                pl.BlockSpec((1, e_tile), lambda i, j: (0, j)),        # node_out row
                pl.BlockSpec((e_tile, rd_pad), lambda i, j: (j, 0)),   # messages
                pl.BlockSpec((rd_pad, out_pad), lambda i, j: (0, 0)),  # W (flat)
                pl.BlockSpec((1, out_pad), lambda i, j: (0, 0)),       # b
            ],
            out_specs=pl.BlockSpec((n_tile, out_pad), lambda i, j: (i, 0)),
            scratch_shapes=[pltpu.VMEM((n_tile, rd_pad), jnp.float32)],
        ),
        compiler_params=pltpu.CompilerParams(
            dimension_semantics=("parallel", "arbitrary"),
            vmem_limit_bytes=vmem_limit),
        cost_estimate=sc_cost,
    )(no_p, msg_exp, wl_p, bl_p)
    return out[:N, :out_dim]


def _reference(x, edge_list, edge_weight, edge_feature, params, *, num_relation):
    """Pure-JAX f32 reference mirroring the PyTorch forward."""
    N, D = x.shape
    R = num_relation
    W, b, We, be = params["W"], params["b"], params["We"], params["be"]
    node_in = edge_list[:, 0]
    node_out = edge_list[:, 1] * R + edge_list[:, 2]
    msg = x[node_in] + edge_feature @ We + be
    upd = jax.ops.segment_sum(msg * edge_weight[:, None], node_out,
                              num_segments=N * R)
    upd = upd.reshape(N, R * D)
    return jnp.maximum(upd @ W + b, 0.0)


if __name__ == "__main__":
    key = jax.random.PRNGKey(0)
    k = jax.random.split(key, 8)

    # small synthetic "graph"
    num_node = 8
    input_dim = 16
    output_dim = 32
    num_relation = 4
    edge_input_dim = 8
    num_edges = 64

    x = jax.random.normal(k[0], (num_node, input_dim), dtype=jnp.float32)
    node_in = jax.random.randint(k[1], (num_edges,), 0, num_node)
    node_out = jax.random.randint(k[2], (num_edges,), 0, num_node)
    relation = jax.random.randint(k[3], (num_edges,), 0, num_relation)
    edge_list = jnp.stack([node_in, node_out, relation], axis=1).astype(jnp.int32)
    edge_weight = jax.random.uniform(k[4], (num_edges,), dtype=jnp.float32)
    edge_feature = jax.random.normal(k[5], (num_edges, edge_input_dim),
                                     dtype=jnp.float32)

    # deterministic parameter init (shapes from the module's __init__)
    params = {
        # nn.Linear(num_relation * input_dim, output_dim) stored transposed
        "W": 0.05 * jax.random.normal(k[6], (num_relation * input_dim, output_dim),
                                      dtype=jnp.float32),
        "b": jnp.linspace(-0.1, 0.1, output_dim, dtype=jnp.float32),
        # nn.Linear(edge_input_dim, input_dim) stored transposed
        "We": 0.05 * jax.random.normal(k[7], (edge_input_dim, input_dim),
                                       dtype=jnp.float32),
        "be": jnp.linspace(-0.05, 0.05, input_dim, dtype=jnp.float32),
    }

    out = geometric_relational_graph_conv(x, edge_list, edge_weight, edge_feature,
                                          params, num_relation=num_relation)
    out = jax.block_until_ready(out)

    ref = _reference(x, edge_list, edge_weight, edge_feature, params,
                     num_relation=num_relation)
    assert out.shape == (num_node, output_dim)
    # bf16 rounding of x / edge_feature / messages (one-hot values are exact)
    # plus a different accumulation order; tolerance reflects that.
    assert jnp.allclose(out, ref, atol=5e-2, rtol=5e-2), "mismatch vs reference"

    print("KERNEL_OK")
</pallas_src>

<mosaic_0001>
module attributes {stable_mosaic.version = 11 : i64} {
  func.func @_message_kernel(%arg0: i32, %arg1: memref<8x16xbf16, #tpu.memory_space<vmem>>, %arg2: memref<64x1xi32, #tpu.memory_space<vmem>>, %arg3: memref<64x1xi32, #tpu.memory_space<vmem>>, %arg4: memref<64x1xf32, #tpu.memory_space<vmem>>, %arg5: memref<64x8xbf16, #tpu.memory_space<vmem>>, %arg6: memref<8x16xbf16, #tpu.memory_space<vmem>>, %arg7: memref<1x16xf32, #tpu.memory_space<vmem>>, %arg8: memref<64x128xbf16, #tpu.memory_space<vmem>>) attributes {dimension_semantics = [#tpu.dimension_semantics<parallel>], iteration_bounds = array<i64: 1>, scalar_prefetch = 0 : i64, scratch_operands = 0 : i64, tpu.core_type = #tpu.core_type<tc>, window_params = [{pipeline_mode = #tpu.pipeline_mode<synchronous>, transform_indices = @transform_0, window_bounds = array<i64: 8, 16>}, {transform_indices = @transform_1, window_bounds = array<i64: 64, 1>}, {transform_indices = @transform_2, window_bounds = array<i64: 64, 1>}, {transform_indices = @transform_3, window_bounds = array<i64: 64, 1>}, {transform_indices = @transform_4, window_bounds = array<i64: 64, 8>}, {pipeline_mode = #tpu.pipeline_mode<synchronous>, transform_indices = @transform_5, window_bounds = array<i64: 8, 16>}, {pipeline_mode = #tpu.pipeline_mode<synchronous>, transform_indices = @transform_6, window_bounds = array<i64: 1, 16>}, {transform_indices = @transform_7, window_bounds = array<i64: 64, 128>}]} {
    %0 = tpu.iota {dimensions = array<i32: 1>} : vector<64x8xi32>
    %c0 = arith.constant 0 : index
    %c0_0 = arith.constant 0 : index
    %1 = vector.load %arg2[%c0, %c0_0] : memref<64x1xi32, #tpu.memory_space<vmem>>, vector<64x1xi32>
    %2 = vector.broadcast %1 : vector<64x1xi32> to vector<64x8xi32>
    %3 = arith.cmpi eq, %0, %2 : vector<64x8xi32>
    %4 = arith.extui %3 : vector<64x8xi1> to vector<64x8xi32>
    %5 = arith.sitofp %4 : vector<64x8xi32> to vector<64x8xf32>
    %6 = arith.truncf %5 : vector<64x8xf32> to vector<64x8xbf16>
    %c0_1 = arith.constant 0 : index
    %c0_2 = arith.constant 0 : index
    %7 = vector.load %arg1[%c0_1, %c0_2] : memref<8x16xbf16, #tpu.memory_space<vmem>>, vector<8x16xbf16>
    %cst = arith.constant dense<0.000000e+00> : vector<64x16xf32>
    %8 = tpu.matmul %6, %7, %cst {dimension_numbers = #tpu.dot_dimension_numbers<[1], [0], [0], [1], [0, 0, 1, 1], [], []>} : vector<64x8xbf16>, vector<8x16xbf16>, vector<64x16xf32> -> vector<64x16xf32>
    %c0_3 = arith.constant 0 : index
    %c0_4 = arith.constant 0 : index
    %9 = vector.load %arg5[%c0_3, %c0_4] : memref<64x8xbf16, #tpu.memory_space<vmem>>, vector<64x8xbf16>
    %c0_5 = arith.constant 0 : index
    %c0_6 = arith.constant 0 : index
    %10 = vector.load %arg6[%c0_5, %c0_6] : memref<8x16xbf16, #tpu.memory_space<vmem>>, vector<8x16xbf16>
    %cst_7 = arith.constant dense<0.000000e+00> : vector<64x16xf32>
    %11 = tpu.matmul %9, %10, %cst_7 {dimension_numbers = #tpu.dot_dimension_numbers<[1], [0], [0], [1], [0, 0, 1, 1], [], []>} : vector<64x8xbf16>, vector<8x16xbf16>, vector<64x16xf32> -> vector<64x16xf32>
    %12 = arith.addf %8, %11 : vector<64x16xf32>
    %c0_8 = arith.constant 0 : index
    %c0_9 = arith.constant 0 : index
    %13 = vector.load %arg7[%c0_8, %c0_9] : memref<1x16xf32, #tpu.memory_space<vmem>>, vector<1x16xf32>
    %14 = vector.broadcast %13 : vector<1x16xf32> to vector<64x16xf32>
    %15 = arith.addf %12, %14 : vector<64x16xf32>
    %c0_10 = arith.constant 0 : index
    %c0_11 = arith.constant 0 : index
    %16 = vector.load %arg4[%c0_10, %c0_11] : memref<64x1xf32, #tpu.memory_space<vmem>>, vector<64x1xf32>
    %17 = vector.broadcast %16 : vector<64x1xf32> to vector<64x16xf32>
    %18 = arith.mulf %15, %17 : vector<64x16xf32>
    %19 = arith.truncf %18 : vector<64x16xf32> to vector<64x16xbf16>
    %c0_12 = arith.constant 0 : index
    %c0_13 = arith.constant 0 : index
    %20 = vector.load %arg3[%c0_12, %c0_13] : memref<64x1xi32, #tpu.memory_space<vmem>>, vector<64x1xi32>
    %cst_14 = arith.constant 0.000000e+00 : bf16
    %21 = vector.broadcast %cst_14 : bf16 to vector<64x16xbf16>
    %c0_i32 = arith.constant 0 : i32
    %22 = vector.broadcast %c0_i32 : i32 to vector<64x1xi32>
    %23 = arith.cmpi eq, %20, %22 : vector<64x1xi32>
    %24 = vector.shape_cast %23 : vector<64x1xi1> to vector<64x1xi1>
    %25 = vector.broadcast %24 : vector<64x1xi1> to vector<64x16xi1>
    %26 = arith.select %25, %19, %21 : vector<64x16xi1>, vector<64x16xbf16>
    %c0_15 = arith.constant 0 : index
    %c0_16 = arith.constant 0 : index
    %27 = vector.load %arg8[%c0_15, %c0_16] : memref<64x128xbf16, #tpu.memory_space<vmem>>, vector<64x16xbf16>
    tpu.vector_store %arg8[%c0_15, %c0_16], %26 {strides = array<i32>} : memref<64x128xbf16, #tpu.memory_space<vmem>>, vector<64x16xbf16>,
    %c1_i32 = arith.constant 1 : i32
    %28 = vector.broadcast %c1_i32 : i32 to vector<64x1xi32>
    %29 = arith.cmpi eq, %20, %28 : vector<64x1xi32>
    %30 = vector.shape_cast %29 : vector<64x1xi1> to vector<64x1xi1>
    %31 = vector.broadcast %30 : vector<64x1xi1> to vector<64x16xi1>
    %32 = arith.select %31, %19, %21 : vector<64x16xi1>, vector<64x16xbf16>
    %c0_17 = arith.constant 0 : index
    %c16 = arith.constant 16 : index
    %33 = vector.load %arg8[%c0_17, %c16] : memref<64x128xbf16, #tpu.memory_space<vmem>>, vector<64x16xbf16>
    tpu.vector_store %arg8[%c0_17, %c16], %32 {strides = array<i32>} : memref<64x128xbf16, #tpu.memory_space<vmem>>, vector<64x16xbf16>,
    %c2_i32 = arith.constant 2 : i32
    %34 = vector.broadcast %c2_i32 : i32 to vector<64x1xi32>
    %35 = arith.cmpi eq, %20, %34 : vector<64x1xi32>
    %36 = vector.shape_cast %35 : vector<64x1xi1> to vector<64x1xi1>
    %37 = vector.broadcast %36 : vector<64x1xi1> to vector<64x16xi1>
    %38 = arith.select %37, %19, %21 : vector<64x16xi1>, vector<64x16xbf16>
    %c0_18 = arith.constant 0 : index
    %c32 = arith.constant 32 : index
    %39 = vector.load %arg8[%c0_18, %c32] : memref<64x128xbf16, #tpu.memory_space<vmem>>, vector<64x16xbf16>
    tpu.vector_store %arg8[%c0_18, %c32], %38 {strides = array<i32>} : memref<64x128xbf16, #tpu.memory_space<vmem>>, vector<64x16xbf16>,
    %c3_i32 = arith.constant 3 : i32
    %40 = vector.broadcast %c3_i32 : i32 to vector<64x1xi32>
    %41 = arith.cmpi eq, %20, %40 : vector<64x1xi32>
    %42 = vector.shape_cast %41 : vector<64x1xi1> to vector<64x1xi1>
    %43 = vector.broadcast %42 : vector<64x1xi1> to vector<64x16xi1>
    %44 = arith.select %43, %19, %21 : vector<64x16xi1>, vector<64x16xbf16>
    %c0_19 = arith.constant 0 : index
    %c48 = arith.constant 48 : index
    %45 = vector.load %arg8[%c0_19, %c48] : memref<64x128xbf16, #tpu.memory_space<vmem>>, vector<64x16xbf16>
    tpu.vector_store %arg8[%c0_19, %c48], %44 {strides = array<i32>} : memref<64x128xbf16, #tpu.memory_space<vmem>>, vector<64x16xbf16>,
    %cst_20 = arith.constant 0.000000e+00 : bf16
    %46 = vector.broadcast %cst_20 : bf16 to vector<64x64xbf16>
    %c0_21 = arith.constant 0 : index
    %c64 = arith.constant 64 : index
    %47 = vector.load %arg8[%c0_21, %c64] : memref<64x128xbf16, #tpu.memory_space<vmem>>, vector<64x64xbf16>
    tpu.vector_store %arg8[%c0_21, %c64], %46 {strides = array<i32>} : memref<64x128xbf16, #tpu.memory_space<vmem>>, vector<64x64xbf16>,
    return
  }
  func.func @transform_0(%arg0: i32) -> (i32, i32) {
    %c0_i32 = arith.constant 0 : i32
    %c0_i32_0 = arith.constant 0 : i32
    %c0_i32_1 = arith.constant 0 : i32
    return %c0_i32, %c0_i32_0 : i32, i32
  }
  func.func @transform_1(%arg0: i32) -> (i32, i32) {
    %c0_i32 = arith.constant 0 : i32
    %c0_i32_0 = arith.constant 0 : i32
    return %arg0, %c0_i32 : i32, i32
  }
  func.func @transform_2(%arg0: i32) -> (i32, i32) {
    %c0_i32 = arith.constant 0 : i32
    %c0_i32_0 = arith.constant 0 : i32
    return %arg0, %c0_i32 : i32, i32
  }
  func.func @transform_3(%arg0: i32) -> (i32, i32) {
    %c0_i32 = arith.constant 0 : i32
    %c0_i32_0 = arith.constant 0 : i32
    return %arg0, %c0_i32 : i32, i32
  }
  func.func @transform_4(%arg0: i32) -> (i32, i32) {
    %c0_i32 = arith.constant 0 : i32
    %c0_i32_0 = arith.constant 0 : i32
    return %arg0, %c0_i32 : i32, i32
  }
  func.func @transform_5(%arg0: i32) -> (i32, i32) {
    %c0_i32 = arith.constant 0 : i32
    %c0_i32_0 = arith.constant 0 : i32
    %c0_i32_1 = arith.constant 0 : i32
    return %c0_i32, %c0_i32_0 : i32, i32
  }
  func.func @transform_6(%arg0: i32) -> (i32, i32) {
    %c0_i32 = arith.constant 0 : i32
    %c0_i32_0 = arith.constant 0 : i32
    %c0_i32_1 = arith.constant 0 : i32
    return %c0_i32, %c0_i32_0 : i32, i32
  }
  func.func @transform_7(%arg0: i32) -> (i32, i32) {
    %c0_i32 = arith.constant 0 : i32
    %c0_i32_0 = arith.constant 0 : i32
    return %arg0, %c0_i32 : i32, i32
  }
}

</mosaic_0001>

<llo_original>
// kernel: tpu_custom_call.1
$region0: #{tpu_custom_call.1}
  #allocation0 [shape = 'u32[]', space=smem, size = 0x4, offset = 0x4, fixed_abs, tag = 'smem constant byte address 0x4 - core index']
  #allocation1 [shape = 'u32[72,128]{1,0:T(1,128)}', space=vmem, size = 0x9000, scoped, tag = 'internal scratch']
  %s0 = inlined_call_operand.vmem [shape: bf16[8,16], index: 0, kind: input, shape index: {}]
  %s1 = inlined_call_operand.vmem [shape: s32[64,1], index: 1, kind: input, shape index: {}]
  %s2 = inlined_call_operand.vmem [shape: s32[64,1], index: 2, kind: input, shape index: {}]
  %s3 = inlined_call_operand.vmem [shape: f32[64,1], index: 3, kind: input, shape index: {}]
  %s4 = inlined_call_operand.vmem [shape: bf16[64,8], index: 4, kind: input, shape index: {}]
  %s5 = inlined_call_operand.vmem [shape: bf16[8,16], index: 5, kind: input, shape index: {}]
  %s6 = inlined_call_operand.vmem [shape: f32[1,16], index: 6, kind: input, shape index: {}]
  %s7 = inlined_call_operand.hbm [shape: bf16[64,128], index: 7, kind: output, shape index: {}]
  %s8 = sld [smem:[#allocation0]]
  $region38: #{tpu_custom_call.1} parent=0
    _
  %s10 = ssub.s32 1, %s8
  %s11 = scalar_select 0, %s10, %s8
  $region1: #{tpu_custom_call.1} parent=0
    #allocation2 [shape = 'u8[16384]{0}', space=vmem, size = 0x4000, scoped, tag = 'output window, operand 0, single buffered']
    #allocation3 [shape = 's32[1]{0}', space=sflag, size = 0x4, scoped, tag = 'scoped memory for tpu_custom_call.1']
    %12 = vsyncpa [#allocation3], 0
    // Predicated region
    $region2: #{tpu_custom_call.1} parent=1 // pred_check
      _
    $region3: #{tpu_custom_call.1} parent=1 // pred_check_branch
      %14 = sbr.rel (0) target = $region5
    $region4: #{tpu_custom_call.1} parent=1 // pred_region
      _
    $region5: #{tpu_custom_call.1} parent=1 // pred_fallthru
      _
    // Predicated region
    $region6: #{tpu_custom_call.1} parent=1 // pred_check
      _
    $region7: #{tpu_custom_call.1} parent=1 // pred_check_branch
      %16 = sbr.rel (0) target = $region9
    $region8: #{tpu_custom_call.1} parent=1 // pred_region
      _
    $region9: #{tpu_custom_call.1} parent=1 // pred_fallthru
      _
    // Predicated region
    $region10: #{tpu_custom_call.1} parent=1 // pred_check
      _
    $region11: #{tpu_custom_call.1} parent=1 // pred_check_branch
      %18 = sbr.rel (0) target = $region13
    $region12: #{tpu_custom_call.1} parent=1 // pred_region
      _
    $region13: #{tpu_custom_call.1} parent=1 // pred_fallthru
      _
    // Predicated region
    $region14: #{tpu_custom_call.1} parent=1 // pred_check
      _
    $region15: #{tpu_custom_call.1} parent=1 // pred_check_branch
      %20 = sbr.rel (0) target = $region17
    $region16: #{tpu_custom_call.1} parent=1 // pred_region
      _
    $region17: #{tpu_custom_call.1} parent=1 // pred_fallthru
      _
    // Predicated region
    $region18: #{tpu_custom_call.1} parent=1 // pred_check
      _
    $region19: #{tpu_custom_call.1} parent=1 // pred_check_branch
      %22 = sbr.rel (0) target = $region21
    $region20: #{tpu_custom_call.1} parent=1 // pred_region
      _
    $region21: #{tpu_custom_call.1} parent=1 // pred_fallthru
      _
    // Predicated region
    $region22: #{tpu_custom_call.1} parent=1 // pred_check
      _
    $region23: #{tpu_custom_call.1} parent=1 // pred_check_branch
      %24 = sbr.rel (0) target = $region25
    $region24: #{tpu_custom_call.1} parent=1 // pred_region
      _
    $region25: #{tpu_custom_call.1} parent=1 // pred_fallthru
      _
    // Predicated region
    $region26: #{tpu_custom_call.1} parent=1 // pred_check
      _
    $region27: #{tpu_custom_call.1} parent=1 // pred_check_branch
      %26 = sbr.rel (0) target = $region29
    $region28: #{tpu_custom_call.1} parent=1 // pred_region
      _
    $region29: #{tpu_custom_call.1} parent=1 // pred_fallthru
      _
    %v28 = vlaneseq
    %v29 = vand.u32 %v28, 127
    %v30 = vld [vmem:[%s1] sm:$0xff]
    %v31 = vld [vmem:[%s1 + $0x8] sm:$0xff]
    %v32 = vld [vmem:[%s1 + $0x10] sm:$0xff]
    %v33 = vld [vmem:[%s1 + $0x18] sm:$0xff]
    %v34 = vld [vmem:[%s1 + $0x20] sm:$0xff]
    %v35 = vld [vmem:[%s1 + $0x28] sm:$0xff]
    %v36 = vld [vmem:[%s1 + $0x30] sm:$0xff]
    %v37 = vld [vmem:[%s1 + $0x38] sm:$0xff]
    %38 = vset.pattern.permute.xlu0 0
    %39 = vperm.xlu0 %38, %v30
    %v40 = vpop.permute.xlu0 %39
    %41 = vset.pattern.permute.xlu0 0
    %42 = vperm.xlu0 %41, %v31
    %v43 = vpop.permute.xlu0 %42
    %44 = vset.pattern.permute.xlu0 0
    %45 = vperm.xlu0 %44, %v32
    %v46 = vpop.permute.xlu0 %45
    %47 = vset.pattern.permute.xlu0 0
    %48 = vperm.xlu0 %47, %v33
    %v49 = vpop.permute.xlu0 %48
    %50 = vset.pattern.permute.xlu0 0
    %51 = vperm.xlu0 %50, %v34
    %v52 = vpop.permute.xlu0 %51
    %53 = vset.pattern.permute.xlu0 0
    %54 = vperm.xlu0 %53, %v35
    %v55 = vpop.permute.xlu0 %54
    %56 = vset.pattern.permute.xlu0 0
    %57 = vperm.xlu0 %56, %v36
    %v58 = vpop.permute.xlu0 %57
    %59 = vset.pattern.permute.xlu0 0
    %60 = vperm.xlu0 %59, %v37
    %v61 = vpop.permute.xlu0 %60
    %vm62 = vcmp.eq.s32.totalorder %v29, %v40
    %vm63 = vcmp.eq.s32.totalorder %v29, %v43
    %vm64 = vcmp.eq.s32.totalorder %v29, %v46
    %vm65 = vcmp.eq.s32.totalorder %v29, %v49
    %vm66 = vcmp.eq.s32.totalorder %v29, %v52
    %vm67 = vcmp.eq.s32.totalorder %v29, %v55
    %vm68 = vcmp.eq.s32.totalorder %v29, %v58
    %vm69 = vcmp.eq.s32.totalorder %v29, %v61
    %v70 = vsel %vm62, 1, 0
    %v71 = vsel %vm63, 1, 0
    %v72 = vsel %vm64, 1, 0
    %v73 = vsel %vm65, 1, 0
    %v74 = vsel %vm66, 1, 0
    %v75 = vsel %vm67, 1, 0
    %v76 = vsel %vm68, 1, 0
    %v77 = vsel %vm69, 1, 0
    %v78 = vcvt.s32.f32 %v70
    %v79 = vcvt.s32.f32 %v71
    %v80 = vcvt.s32.f32 %v72
    %v81 = vcvt.s32.f32 %v73
    %v82 = vcvt.s32.f32 %v74
    %v83 = vcvt.s32.f32 %v75
    %v84 = vcvt.s32.f32 %v76
    %v85 = vcvt.s32.f32 %v77
    %v86 = vpack.c.bf16 %v79, %v78
    %v87 = vpack.c.bf16 %v81, %v80
    %v88 = vpack.c.bf16 %v83, %v82
    %v89 = vpack.c.bf16 %v85, %v84
    %v90 = vld [vmem:[%s0] sm:$0xf]
    %v91 = vld [vmem:[%s4] sm:$0xf]
    %v92 = vld [vmem:[%s4 + $0x4] sm:$0xf]
    %v93 = vld [vmem:[%s4 + $0x8] sm:$0xf]
    %v94 = vld [vmem:[%s4 + $0xc] sm:$0xf]
    %v95 = vld [vmem:[%s4 + $0x10] sm:$0xf]
    %v96 = vld [vmem:[%s4 + $0x14] sm:$0xf]
    %v97 = vld [vmem:[%s4 + $0x18] sm:$0xf]
    %v98 = vld [vmem:[%s4 + $0x1c] sm:$0xf]
    %v99 = vld [vmem:[%s5] sm:$0xf]
    %v108 = vunpack.c.l.b16 %v91
    %v109 = vunpack.c.l.b16 %v92
    %v110 = vunpack.c.l.b16 %v93
    %v111 = vunpack.c.l.b16 %v94
    %v112 = vunpack.c.l.b16 %v95
    %v113 = vunpack.c.l.b16 %v96
    %v114 = vunpack.c.l.b16 %v97
    %v115 = vunpack.c.l.b16 %v98
    %v116 = vpack.c.b16 %v109, %v108
    %v117 = vpack.c.b16 %v111, %v110
    %v118 = vpack.c.b16 %v113, %v112
    %v119 = vpack.c.b16 %v115, %v114
    %vm120 = vcmask 64512
    %v122 = vsel %vm120, %v116, 0
    %v125 = vsel %vm120, %v117, 0
    %v128 = vsel %vm120, %v118, 0
    %v131 = vsel %vm120, %v119, 0
    %vm133 = vcmask 1043456
    %v135 = vsel %vm133, %v99, 0
    %137 = vmatpush.bf16.msra.mxu0 0
    %138 = vmatpush.bf16.msra.mxu0 0
    %139 = vmatpush.bf16.msra.mxu0 0
    %140 = vmatpush.bf16.msra.mxu0 0
    %141 = vmatpush.bf16.msra.mxu0 0
    %142 = vmatpush.bf16.msra.mxu0 0
    %143 = vmatpush.bf16.msra.mxu0 0
    %144 = vmatpush.bf16.msra.mxu0 %v135
    %145 = vmatmul.bf16.gmra.mxu0 %v122
    %v146 = vpop.f32.mrf.mxu0
    %v147 = vadd.f32 0.0, %v146
    %v148 = vpop.f32.mrf.mxu0
    %v149 = vadd.f32 0.0, %v148
    %150 = vmatmul.bf16.gmra.mxu0 %v125
    %v151 = vpop.f32.mrf.mxu0
    %v152 = vadd.f32 0.0, %v151
    %v153 = vpop.f32.mrf.mxu0
    %v154 = vadd.f32 0.0, %v153
    %155 = vmatmul.bf16.gmra.mxu0 %v128
    %v156 = vpop.f32.mrf.mxu0
    %v157 = vadd.f32 0.0, %v156
    %v158 = vpop.f32.mrf.mxu0
    %v159 = vadd.f32 0.0, %v158
    %160 = vmatmul.bf16.gmra.mxu0 %v131
    %v161 = vpop.f32.mrf.mxu0
    %v162 = vadd.f32 0.0, %v161
    %v163 = vpop.f32.mrf.mxu0
    %v164 = vadd.f32 0.0, %v163
    %165 = vdwg.mxu0
    %v167 = vsel %vm120, %v86, 0
    %v170 = vsel %vm120, %v87, 0
    %v173 = vsel %vm120, %v88, 0
    %v176 = vsel %vm120, %v89, 0
    %v179 = vsel %vm133, %v90, 0
    %181 = vmatpush.bf16.msra.mxu0 0
    %182 = vmatpush.bf16.msra.mxu0 0
    %183 = vmatpush.bf16.msra.mxu0 0
    %184 = vmatpush.bf16.msra.mxu0 0
    %185 = vmatpush.bf16.msra.mxu0 0
    %186 = vmatpush.bf16.msra.mxu0 0
    %187 = vmatpush.bf16.msra.mxu0 0
    %188 = vmatpush.bf16.msra.mxu0 %v179
    %189 = vmatmul.bf16.gmra.mxu0 %v167
    %v190 = vpop.f32.mrf.mxu0
    %v191 = vadd.f32 %v147, %v190
    %v192 = vpop.f32.mrf.mxu0
    %v193 = vadd.f32 %v149, %v192
    %194 = vmatmul.bf16.gmra.mxu0 %v170
    %v195 = vpop.f32.mrf.mxu0
    %v196 = vadd.f32 %v152, %v195
    %v197 = vpop.f32.mrf.mxu0
    %v198 = vadd.f32 %v154, %v197
    %199 = vmatmul.bf16.gmra.mxu0 %v173
    %v200 = vpop.f32.mrf.mxu0
    %v201 = vadd.f32 %v157, %v200
    %v202 = vpop.f32.mrf.mxu0
    %v203 = vadd.f32 %v159, %v202
    %204 = vmatmul.bf16.gmra.mxu0 %v176
    %v205 = vpop.f32.mrf.mxu0
    %v206 = vadd.f32 %v162, %v205
    %v207 = vpop.f32.mrf.mxu0
    %v208 = vadd.f32 %v164, %v207
    %209 = vdwg.mxu0
    %v210 = vld [vmem:[%s6] sm:$0x1]
    %v212 = vperm.slane %v210, 0
    %v214 = vadd.f32 %v191, %v212
    %v215 = vadd.f32 %v193, %v212
    %v216 = vadd.f32 %v196, %v212
    %v217 = vadd.f32 %v198, %v212
    %v218 = vadd.f32 %v201, %v212
    %v219 = vadd.f32 %v203, %v212
    %v220 = vadd.f32 %v206, %v212
    %v221 = vadd.f32 %v208, %v212
    %v222 = vld [vmem:[%s3] sm:$0xff]
    %v223 = vld [vmem:[%s3 + $0x8] sm:$0xff]
    %v224 = vld [vmem:[%s3 + $0x10] sm:$0xff]
    %v225 = vld [vmem:[%s3 + $0x18] sm:$0xff]
    %v226 = vld [vmem:[%s3 + $0x20] sm:$0xff]
    %v227 = vld [vmem:[%s3 + $0x28] sm:$0xff]
    %v228 = vld [vmem:[%s3 + $0x30] sm:$0xff]
    %v229 = vld [vmem:[%s3 + $0x38] sm:$0xff]
    %231 = vset.pattern.permute.xlu0 0
    %232 = vperm.xlu0 %231, %v222
    %v233 = vpop.permute.xlu0 %232
    %236 = vset.pattern.permute.xlu0 0
    %237 = vperm.xlu0 %236, %v223
    %v238 = vpop.permute.xlu0 %237
    %241 = vset.pattern.permute.xlu0 0
    %242 = vperm.xlu0 %241, %v224
    %v243 = vpop.permute.xlu0 %242
    %246 = vset.pattern.permute.xlu0 0
    %247 = vperm.xlu0 %246, %v225
    %v248 = vpop.permute.xlu0 %247
    %251 = vset.pattern.permute.xlu0 0
    %252 = vperm.xlu0 %251, %v226
    %v253 = vpop.permute.xlu0 %252
    %256 = vset.pattern.permute.xlu0 0
    %257 = vperm.xlu0 %256, %v227
    %v258 = vpop.permute.xlu0 %257
    %261 = vset.pattern.permute.xlu0 0
    %262 = vperm.xlu0 %261, %v228
    %v263 = vpop.permute.xlu0 %262
    %266 = vset.pattern.permute.xlu0 0
    %267 = vperm.xlu0 %266, %v229
    %v268 = vpop.permute.xlu0 %267
    %v270 = vmul.f32 %v214, %v233
    %v271 = vmul.f32 %v215, %v238
    %v272 = vmul.f32 %v216, %v243
    %v273 = vmul.f32 %v217, %v248
    %v274 = vmul.f32 %v218, %v253
    %v275 = vmul.f32 %v219, %v258
    %v276 = vmul.f32 %v220, %v263
    %v277 = vmul.f32 %v221, %v268
    %v278 = vpack.c.bf16 %v270, %v270
    %v279 = vpack.c.bf16 %v271, %v271
    %v280 = vpack.c.bf16 %v272, %v272
    %v281 = vpack.c.bf16 %v273, %v273
    %v282 = vpack.c.bf16 %v274, %v274
    %v283 = vpack.c.bf16 %v275, %v275
    %v284 = vpack.c.bf16 %v276, %v276
    %v285 = vpack.c.bf16 %v277, %v277
    %v286 = vld [vmem:[%s2] sm:$0xff]
    %v287 = vld [vmem:[%s2 + $0x8] sm:$0xff]
    %v288 = vld [vmem:[%s2 + $0x10] sm:$0xff]
    %v289 = vld [vmem:[%s2 + $0x18] sm:$0xff]
    %v290 = vld [vmem:[%s2 + $0x20] sm:$0xff]
    %v291 = vld [vmem:[%s2 + $0x28] sm:$0xff]
    %v292 = vld [vmem:[%s2 + $0x30] sm:$0xff]
    %v293 = vld [vmem:[%s2 + $0x38] sm:$0xff]
    %vm294 = vcmp.eq.s32.totalorder %v286, 0
    %vm295 = vcmp.eq.s32.totalorder %v287, 0
    %vm296 = vcmp.eq.s32.totalorder %v288, 0
    %vm297 = vcmp.eq.s32.totalorder %v289, 0
    %vm298 = vcmp.eq.s32.totalorder %v290, 0
    %vm299 = vcmp.eq.s32.totalorder %v291, 0
    %vm300 = vcmp.eq.s32.totalorder %v292, 0
    %vm301 = vcmp.eq.s32.totalorder %v293, 0
    %v302 = vsel %vm294, 1, 0
    %v303 = vsel %vm295, 1, 0
    %v304 = vsel %vm296, 1, 0
    %v305 = vsel %vm297, 1, 0
    %v306 = vsel %vm298, 1, 0
    %v307 = vsel %vm299, 1, 0
    %v308 = vsel %vm300, 1, 0
    %v309 = vsel %vm301, 1, 0
    %310 = vset.pattern.permute.xlu0 0
    %311 = vperm.xlu0 %310, %v302
    %v312 = vpop.permute.xlu0 %311
    %313 = vset.pattern.permute.xlu0 0
    %314 = vperm.xlu0 %313, %v303
    %v315 = vpop.permute.xlu0 %314
    %316 = vset.pattern.permute.xlu0 0
    %317 = vperm.xlu0 %316, %v304
    %v318 = vpop.permute.xlu0 %317
    %319 = vset.pattern.permute.xlu0 0
    %320 = vperm.xlu0 %319, %v305
    %v321 = vpop.permute.xlu0 %320
    %322 = vset.pattern.permute.xlu0 0
    %323 = vperm.xlu0 %322, %v306
    %v324 = vpop.permute.xlu0 %323
    %325 = vset.pattern.permute.xlu0 0
    %326 = vperm.xlu0 %325, %v307
    %v327 = vpop.permute.xlu0 %326
    %328 = vset.pattern.permute.xlu0 0
    %329 = vperm.xlu0 %328, %v308
    %v330 = vpop.permute.xlu0 %329
    %331 = vset.pattern.permute.xlu0 0
    %332 = vperm.xlu0 %331, %v309
    %v333 = vpop.permute.xlu0 %332
    %vm334 = vcmp.eq.s32.totalorder %v312, 1
    %vm335 = vcmp.eq.s32.totalorder %v315, 1
    %vm336 = vcmp.eq.s32.totalorder %v318, 1
    %vm337 = vcmp.eq.s32.totalorder %v321, 1
    %vm338 = vcmp.eq.s32.totalorder %v324, 1
    %vm339 = vcmp.eq.s32.totalorder %v327, 1
    %vm340 = vcmp.eq.s32.totalorder %v330, 1
    %vm341 = vcmp.eq.s32.totalorder %v333, 1
    %vm342 = vmpackc.low %vm334, %vm334
    %vm343 = vmpackc.low %vm335, %vm335
    %vm344 = vmpackc.low %vm336, %vm336
    %vm345 = vmpackc.low %vm337, %vm337
    %vm346 = vmpackc.low %vm338, %vm338
    %vm347 = vmpackc.low %vm339, %vm339
    %vm348 = vmpackc.low %vm340, %vm340
    %vm349 = vmpackc.low %vm341, %vm341
    %v350 = vsel %vm342, %v278, 0
    %v351 = vsel %vm343, %v279, 0
    %v352 = vsel %vm344, %v280, 0
    %v353 = vsel %vm345, %v281, 0
    %v354 = vsel %vm346, %v282, 0
    %v355 = vsel %vm347, %v283, 0
    %v356 = vsel %vm348, %v284, 0
    %v357 = vsel %vm349, %v285, 0
    %vm358 = vcmask 125952
    %359 = vst.msk [vmem:[#allocation2] sm:$0xf] %vm358, %v350
    %360 = vst.msk [vmem:[#allocation2 + $0x4] sm:$0xf] %vm358, %v351
    %361 = vst.msk [vmem:[#allocation2 + $0x8] sm:$0xf] %vm358, %v352
    %362 = vst.msk [vmem:[#allocation2 + $0xc] sm:$0xf] %vm358, %v353
    %363 = vst.msk [vmem:[#allocation2 + $0x10] sm:$0xf] %vm358, %v354
    %364 = vst.msk [vmem:[#allocation2 + $0x14] sm:$0xf] %vm358, %v355
    %365 = vst.msk [vmem:[#allocation2 + $0x18] sm:$0xf] %vm358, %v356
    %366 = vst.msk [vmem:[#allocation2 + $0x1c] sm:$0xf] %vm358, %v357
    %vm367 = vcmp.eq.s32.totalorder %v286, 1
    %vm368 = vcmp.eq.s32.totalorder %v287, 1
    %vm369 = vcmp.eq.s32.totalorder %v288, 1
    %vm370 = vcmp.eq.s32.totalorder %v289, 1
    %vm371 = vcmp.eq.s32.totalorder %v290, 1
    %vm372 = vcmp.eq.s32.totalorder %v291, 1
    %vm373 = vcmp.eq.s32.totalorder %v292, 1
    %vm374 = vcmp.eq.s32.totalorder %v293, 1
    %v375 = vsel %vm367, 1, 0
    %v376 = vsel %vm368, 1, 0
    %v377 = vsel %vm369, 1, 0
    %v378 = vsel %vm370, 1, 0
    %v379 = vsel %vm371, 1, 0
    %v380 = vsel %vm372, 1, 0
    %v381 = vsel %vm373, 1, 0
    %v382 = vsel %vm374, 1, 0
    %383 = vset.pattern.permute.xlu0 0
    %384 = vperm.xlu0 %383, %v375
    %v385 = vpop.permute.xlu0 %384
    %386 = vset.pattern.permute.xlu0 0
    %387 = vperm.xlu0 %386, %v376
    %v388 = vpop.permute.xlu0 %387
    %389 = vset.pattern.permute.xlu0 0
    %390 = vperm.xlu0 %389, %v377
    %v391 = vpop.permute.xlu0 %390
    %392 = vset.pattern.permute.xlu0 0
    %393 = vperm.xlu0 %392, %v378
    %v394 = vpop.permute.xlu0 %393
    %395 = vset.pattern.permute.xlu0 0
    %396 = vperm.xlu0 %395, %v379
    %v397 = vpop.permute.xlu0 %396
    %398 = vset.pattern.permute.xlu0 0
    %399 = vperm.xlu0 %398, %v380
    %v400 = vpop.permute.xlu0 %399
    %401 = vset.pattern.permute.xlu0 0
    %402 = vperm.xlu0 %401, %v381
    %v403 = vpop.permute.xlu0 %402
    %404 = vset.pattern.permute.xlu0 0
    %405 = vperm.xlu0 %404, %v382
    %v406 = vpop.permute.xlu0 %405
    %vm407 = vcmp.eq.s32.totalorder %v385, 1
    %vm408 = vcmp.eq.s32.totalorder %v388, 1
    %vm409 = vcmp.eq.s32.totalorder %v391, 1
    %vm410 = vcmp.eq.s32.totalorder %v394, 1
    %vm411 = vcmp.eq.s32.totalorder %v397, 1
    %vm412 = vcmp.eq.s32.totalorder %v400, 1
    %vm413 = vcmp.eq.s32.totalorder %v403, 1
    %vm414 = vcmp.eq.s32.totalorder %v406, 1
    %vm415 = vmpackc.low %vm407, %vm407
    %vm416 = vmpackc.low %vm408, %vm408
    %vm417 = vmpackc.low %vm409, %vm409
    %vm418 = vmpackc.low %vm410, %vm410
    %vm419 = vmpackc.low %vm411, %vm411
    %vm420 = vmpackc.low %vm412, %vm412
    %vm421 = vmpackc.low %vm413, %vm413
    %vm422 = vmpackc.low %vm414, %vm414
    %v423 = vsel %vm415, %v278, 0
    %v424 = vsel %vm416, %v279, 0
    %v425 = vsel %vm417, %v280, 0
    %v426 = vsel %vm418, %v281, 0
    %v427 = vsel %vm419, %v282, 0
    %v428 = vsel %vm420, %v283, 0
    %v429 = vsel %vm421, %v284, 0
    %v430 = vsel %vm422, %v285, 0
    %439 = vrot.lane.b32.xlu0 %v423, 16
    %v440 = vpop.permute.xlu0 %439
    %441 = vrot.lane.b32.xlu0 %v424, 16
    %v442 = vpop.permute.xlu0 %441
    %443 = vrot.lane.b32.xlu0 %v425, 16
    %v444 = vpop.permute.xlu0 %443
    %445 = vrot.lane.b32.xlu0 %v426, 16
    %v446 = vpop.permute.xlu0 %445
    %447 = vrot.lane.b32.xlu0 %v427, 16
    %v448 = vpop.permute.xlu0 %447
    %449 = vrot.lane.b32.xlu0 %v428, 16
    %v450 = vpop.permute.xlu0 %449
    %451 = vrot.lane.b32.xlu0 %v429, 16
    %v452 = vpop.permute.xlu0 %451
    %453 = vrot.lane.b32.xlu0 %v430, 16
    %v454 = vpop.permute.xlu0 %453
    %vm463 = vcmask 257152
    %464 = vst.msk [vmem:[#allocation2] sm:$0xf] %vm463, %v440
    %465 = vst.msk [vmem:[#allocation2 + $0x4] sm:$0xf] %vm463, %v442
    %466 = vst.msk [vmem:[#allocation2 + $0x8] sm:$0xf] %vm463, %v444
    %467 = vst.msk [vmem:[#allocation2 + $0xc] sm:$0xf] %vm463, %v446
    %468 = vst.msk [vmem:[#allocation2 + $0x10] sm:$0xf] %vm463, %v448
    %469 = vst.msk [vmem:[#allocation2 + $0x14] sm:$0xf] %vm463, %v450
    %470 = vst.msk [vmem:[#allocation2 + $0x18] sm:$0xf] %vm463, %v452
    %471 = vst.msk [vmem:[#allocation2 + $0x1c] sm:$0xf] %vm463, %v454
    %vm472 = vcmp.eq.s32.totalorder %v286, 2
    %vm473 = vcmp.eq.s32.totalorder %v287, 2
    %vm474 = vcmp.eq.s32.totalorder %v288, 2
    %vm475 = vcmp.eq.s32.totalorder %v289, 2
    %vm476 = vcmp.eq.s32.totalorder %v290, 2
    %vm477 = vcmp.eq.s32.totalorder %v291, 2
    %vm478 = vcmp.eq.s32.totalorder %v292, 2
    %vm479 = vcmp.eq.s32.totalorder %v293, 2
    %v480 = vsel %vm472, 1, 0
    %v481 = vsel %vm473, 1, 0
    %v482 = vsel %vm474, 1, 0
    %v483 = vsel %vm475, 1, 0
    %v484 = vsel %vm476, 1, 0
    %v485 = vsel %vm477, 1, 0
    %v486 = vsel %vm478, 1, 0
    %v487 = vsel %vm479, 1, 0
    %488 = vset.pattern.permute.xlu0 0
    %489 = vperm.xlu0 %488, %v480
    %v490 = vpop.permute.xlu0 %489
    %491 = vset.pattern.permute.xlu0 0
    %492 = vperm.xlu0 %491, %v481
    %v493 = vpop.permute.xlu0 %492
    %494 = vset.pattern.permute.xlu0 0
    %495 = vperm.xlu0 %494, %v482
    %v496 = vpop.permute.xlu0 %495
    %497 = vset.pattern.permute.xlu0 0
    %498 = vperm.xlu0 %497, %v483
    %v499 = vpop.permute.xlu0 %498
    %500 = vset.pattern.permute.xlu0 0
    %501 = vperm.xlu0 %500, %v484
    %v502 = vpop.permute.xlu0 %501
    %503 = vset.pattern.permute.xlu0 0
    %504 = vperm.xlu0 %503, %v485
    %v505 = vpop.permute.xlu0 %504
    %506 = vset.pattern.permute.xlu0 0
    %507 = vperm.xlu0 %506, %v486
    %v508 = vpop.permute.xlu0 %507
    %509 = vset.pattern.permute.xlu0 0
    %510 = vperm.xlu0 %509, %v487
    %v511 = vpop.permute.xlu0 %510
    %vm512 = vcmp.eq.s32.totalorder %v490, 1
    %vm513 = vcmp.eq.s32.totalorder %v493, 1
    %vm514 = vcmp.eq.s32.totalorder %v496, 1
    %vm515 = vcmp.eq.s32.totalorder %v499, 1
    %vm516 = vcmp.eq.s32.totalorder %v502, 1
    %vm517 = vcmp.eq.s32.totalorder %v505, 1
    %vm518 = vcmp.eq.s32.totalorder %v508, 1
    %vm519 = vcmp.eq.s32.totalorder %v511, 1
    %vm520 = vmpackc.low %vm512, %vm512
    %vm521 = vmpackc.low %vm513, %vm513
    %vm522 = vmpackc.low %vm514, %vm514
    %vm523 = vmpackc.low %vm515, %vm515
    %vm524 = vmpackc.low %vm516, %vm516
    %vm525 = vmpackc.low %vm517, %vm517
    %vm526 = vmpackc.low %vm518, %vm518
    %vm527 = vmpackc.low %vm519, %vm519
    %v528 = vsel %vm520, %v278, 0
    %v529 = vsel %vm521, %v279, 0
    %v530 = vsel %vm522, %v280, 0
    %v531 = vsel %vm523, %v281, 0
    %v532 = vsel %vm524, %v282, 0
    %v533 = vsel %vm525, %v283, 0
    %v534 = vsel %vm526, %v284, 0
    %v535 = vsel %vm527, %v285, 0
    %544 = vrot.lane.b32.xlu0 %v528, 32
    %v545 = vpop.permute.xlu0 %544
    %546 = vrot.lane.b32.xlu0 %v529, 32
    %v547 = vpop.permute.xlu0 %546
    %548 = vrot.lane.b32.xlu0 %v530, 32
    %v549 = vpop.permute.xlu0 %548
    %550 = vrot.lane.b32.xlu0 %v531, 32
    %v551 = vpop.permute.xlu0 %550
    %552 = vrot.lane.b32.xlu0 %v532, 32
    %v553 = vpop.permute.xlu0 %552
    %554 = vrot.lane.b32.xlu0 %v533, 32
    %v555 = vpop.permute.xlu0 %554
    %556 = vrot.lane.b32.xlu0 %v534, 32
    %v557 = vpop.permute.xlu0 %556
    %558 = vrot.lane.b32.xlu0 %v535, 32
    %v559 = vpop.permute.xlu0 %558
    %vm568 = vcmask 388352
    %569 = vst.msk [vmem:[#allocation2] sm:$0xf] %vm568, %v545
    %570 = vst.msk [vmem:[#allocation2 + $0x4] sm:$0xf] %vm568, %v547
    %571 = vst.msk [vmem:[#allocation2 + $0x8] sm:$0xf] %vm568, %v549
    %572 = vst.msk [vmem:[#allocation2 + $0xc] sm:$0xf] %vm568, %v551
    %573 = vst.msk [vmem:[#allocation2 + $0x10] sm:$0xf] %vm568, %v553
    %574 = vst.msk [vmem:[#allocation2 + $0x14] sm:$0xf] %vm568, %v555
    %575 = vst.msk [vmem:[#allocation2 + $0x18] sm:$0xf] %vm568, %v557
    %576 = vst.msk [vmem:[#allocation2 + $0x1c] sm:$0xf] %vm568, %v559
    %vm577 = vcmp.eq.s32.totalorder %v286, 3
    %vm578 = vcmp.eq.s32.totalorder %v287, 3
    %vm579 = vcmp.eq.s32.totalorder %v288, 3
    %vm580 = vcmp.eq.s32.totalorder %v289, 3
    %vm581 = vcmp.eq.s32.totalorder %v290, 3
    %vm582 = vcmp.eq.s32.totalorder %v291, 3
    %vm583 = vcmp.eq.s32.totalorder %v292, 3
    %vm584 = vcmp.eq.s32.totalorder %v293, 3
    %v585 = vsel %vm577, 1, 0
    %v586 = vsel %vm578, 1, 0
    %v587 = vsel %vm579, 1, 0
    %v588 = vsel %vm580, 1, 0
    %v589 = vsel %vm581, 1, 0
    %v590 = vsel %vm582, 1, 0
    %v591 = vsel %vm583, 1, 0
    %v592 = vsel %vm584, 1, 0
    %593 = vset.pattern.permute.xlu0 0
    %594 = vperm.xlu0 %593, %v585
    %v595 = vpop.permute.xlu0 %594
    %596 = vset.pattern.permute.xlu0 0
    %597 = vperm.xlu0 %596, %v586
    %v598 = vpop.permute.xlu0 %597
    %599 = vset.pattern.permute.xlu0 0
    %600 = vperm.xlu0 %599, %v587
    %v601 = vpop.permute.xlu0 %600
    %602 = vset.pattern.permute.xlu0 0
    %603 = vperm.xlu0 %602, %v588
    %v604 = vpop.permute.xlu0 %603
    %605 = vset.pattern.permute.xlu0 0
    %606 = vperm.xlu0 %605, %v589
    %v607 = vpop.permute.xlu0 %606
    %608 = vset.pattern.permute.xlu0 0
    %609 = vperm.xlu0 %608, %v590
    %v610 = vpop.permute.xlu0 %609
    %611 = vset.pattern.permute.xlu0 0
    %612 = vperm.xlu0 %611, %v591
    %v613 = vpop.permute.xlu0 %612
    %614 = vset.pattern.permute.xlu0 0
    %615 = vperm.xlu0 %614, %v592
    %v616 = vpop.permute.xlu0 %615
    %vm617 = vcmp.eq.s32.totalorder %v595, 1
    %vm618 = vcmp.eq.s32.totalorder %v598, 1
    %vm619 = vcmp.eq.s32.totalorder %v601, 1
    %vm620 = vcmp.eq.s32.totalorder %v604, 1
    %vm621 = vcmp.eq.s32.totalorder %v607, 1
    %vm622 = vcmp.eq.s32.totalorder %v610, 1
    %vm623 = vcmp.eq.s32.totalorder %v613, 1
    %vm624 = vcmp.eq.s32.totalorder %v616, 1
    %vm625 = vmpackc.low %vm617, %vm617
    %vm626 = vmpackc.low %vm618, %vm618
    %vm627 = vmpackc.low %vm619, %vm619
    %vm628 = vmpackc.low %vm620, %vm620
    %vm629 = vmpackc.low %vm621, %vm621
    %vm630 = vmpackc.low %vm622, %vm622
    %vm631 = vmpackc.low %vm623, %vm623
    %vm632 = vmpackc.low %vm624, %vm624
    %v633 = vsel %vm625, %v278, 0
    %v634 = vsel %vm626, %v279, 0
    %v635 = vsel %vm627, %v280, 0
    %v636 = vsel %vm628, %v281, 0
    %v637 = vsel %vm629, %v282, 0
    %v638 = vsel %vm630, %v283, 0
    %v639 = vsel %vm631, %v284, 0
    %v640 = vsel %vm632, %v285, 0
    %649 = vrot.lane.b32.xlu0 %v633, 48
    %v650 = vpop.permute.xlu0 %649
    %651 = vrot.lane.b32.xlu0 %v634, 48
    %v652 = vpop.permute.xlu0 %651
    %653 = vrot.lane.b32.xlu0 %v635, 48
    %v654 = vpop.permute.xlu0 %653
    %655 = vrot.lane.b32.xlu0 %v636, 48
    %v656 = vpop.permute.xlu0 %655
    %657 = vrot.lane.b32.xlu0 %v637, 48
    %v658 = vpop.permute.xlu0 %657
    %659 = vrot.lane.b32.xlu0 %v638, 48
    %v660 = vpop.permute.xlu0 %659
    %661 = vrot.lane.b32.xlu0 %v639, 48
    %v662 = vpop.permute.xlu0 %661
    %663 = vrot.lane.b32.xlu0 %v640, 48
    %v664 = vpop.permute.xlu0 %663
    %vm673 = vcmask 519552
    %674 = vst.msk [vmem:[#allocation2] sm:$0xf] %vm673, %v650
    %675 = vst.msk [vmem:[#allocation2 + $0x4] sm:$0xf] %vm673, %v652
    %676 = vst.msk [vmem:[#allocation2 + $0x8] sm:$0xf] %vm673, %v654
    %677 = vst.msk [vmem:[#allocation2 + $0xc] sm:$0xf] %vm673, %v656
    %678 = vst.msk [vmem:[#allocation2 + $0x10] sm:$0xf] %vm673, %v658
    %679 = vst.msk [vmem:[#allocation2 + $0x14] sm:$0xf] %vm673, %v660
    %680 = vst.msk [vmem:[#allocation2 + $0x18] sm:$0xf] %vm673, %v662
    %681 = vst.msk [vmem:[#allocation2 + $0x1c] sm:$0xf] %vm673, %v664
    %vm682 = vcmask 1043968
    %683 = vst.msk [vmem:[#allocation2] sm:$0xf] %vm682, 0
    %684 = vst.msk [vmem:[#allocation2 + $0x4] sm:$0xf] %vm682, 0
    %685 = vst.msk [vmem:[#allocation2 + $0x8] sm:$0xf] %vm682, 0
    %686 = vst.msk [vmem:[#allocation2 + $0xc] sm:$0xf] %vm682, 0
    %687 = vst.msk [vmem:[#allocation2 + $0x10] sm:$0xf] %vm682, 0
    %688 = vst.msk [vmem:[#allocation2 + $0x14] sm:$0xf] %vm682, 0
    %689 = vst.msk [vmem:[#allocation2 + $0x18] sm:$0xf] %vm682, 0
    %690 = vst.msk [vmem:[#allocation2 + $0x1c] sm:$0xf] %vm682, 0
    // Predicated region
    $region30: #{tpu_custom_call.1} parent=1 // pred_check
      _
    $region31: #{tpu_custom_call.1} parent=1 // pred_check_branch
      %692 = sbr.rel (0) target = $region33
    $region32: #{tpu_custom_call.1} parent=1 // pred_region
      %694 = vsyncadd [#allocation3], 0
      %s695 = sshll.u32 [#allocation2], 4
      %s696 = int_to_ptr.vmem [resolvable:$true] %s695
      %s697 = sshll.u32 %s7, 4
      %s698 = int_to_ptr.hbm [resolvable:$true] %s697
      %703 = dma.vmem_to_hbm [thread:$0]  %s696, 512, %s698, [#allocation3], 64, 64, 4
    $region33: #{tpu_custom_call.1} parent=1 // pred_fallthru
      _
    // Predicated region
    $region34: #{tpu_custom_call.1} parent=1 // pred_check
      _
    $region35: #{tpu_custom_call.1} parent=1 // pred_check_branch
      %705 = sbr.rel (0) target = $region37
    $region36: #{tpu_custom_call.1} parent=1 // pred_region
      %707 = dma.done [#allocation3], 512
    $region37: #{tpu_custom_call.1} parent=1 // pred_fallthru
      _
    %708 = vsyncpa [#allocation3], 1

</llo_original>
